<compile_context>
chip_gen: v5e
topology: v5e:2x2
jax: 0.10.0
libtpu: 0.0.40
codegen_flags: <defaults>
</compile_context>

<pallas_src>
import math

import jax
import jax.numpy as jnp
from jax import lax
from jax.experimental import pallas as pl
from jax.experimental.pallas import tpu as pltpu


def _make_sdpa_kernel(masked: bool, inv_sqrt_dk: float):
    def kernel(*refs):
        if masked:
            q_ref, k_ref, v_ref, m_ref, o_ref, w_ref = refs
        else:
            q_ref, k_ref, v_ref, o_ref, w_ref = refs

        q = q_ref[...]                                   # (G, TQ, D) native dtype
        k = k_ref[...]                                   # (G, S,  D)
        v = v_ref[...]                                   # (G, S,  D)

        # Scale Q (O(TQ*D)) instead of the (TQ, S) scores.
        q = q * jnp.asarray(inv_sqrt_dk, dtype=q.dtype)

        # scores = Q @ K^T, transpose folded into the contraction, f32 acc.
        scores = lax.dot_general(
            q, k,
            dimension_numbers=(((2,), (2,)), ((0,), (0,))),
            preferred_element_type=jnp.float32,
        )                                                # (G, TQ, S) f32

        if masked:
            # 0/1 bf16 mask tile, shape (1, TQ, S) or (G, TQ, S); broadcasts
            # over the head-block axis inside the kernel.
            valid = m_ref[...] != 0
            # Row max over *valid* entries only (matches masked_fill(-inf)).
            row_max = jnp.max(
                jnp.where(valid, scores, jnp.float32(-1e30)),
                axis=-1, keepdims=True)
            # Clamp exp argument to <= 0 (no-op for valid entries), then force
            # masked exponentials to exactly zero.  exp never sees huge args.
            exps = jnp.where(
                valid,
                jnp.exp(jnp.minimum(scores - row_max, 0.0)),
                jnp.float32(0.0))
        else:
            row_max = jnp.max(scores, axis=-1, keepdims=True)
            exps = jnp.exp(scores - row_max)

        denom = jnp.sum(exps, axis=-1, keepdims=True)    # (G, TQ, 1)
        inv = 1.0 / denom                                # exact, tiny array
        weights = exps * inv                             # (G, TQ, S) f32

        # Cast once; reuse for both the weights store and the P@V operand
        # (wrapper guarantees w_ref.dtype == v.dtype).
        wv = weights.astype(v.dtype)
        w_ref[...] = wv

        out = lax.dot_general(
            wv, v,
            dimension_numbers=(((2,), (1,)), ((0,), (0,))),
            preferred_element_type=jnp.float32,
        )                                                # (G, TQ, D) f32
        o_ref[...] = out.astype(o_ref.dtype)

    return kernel


def _vmem_capacity_bytes() -> int:
    try:
        return int(pltpu.get_tpu_info().vmem_capacity_bytes)
    except Exception:
        return 64 * 1024 * 1024   # conservative (v7x per-core size)


def _choose_tiling(BH, S, D, itemsize, masked, mask_per_head, budget):
    """Pick (tq, g): query-tile rows and heads per grid step under a VMEM budget."""

    def step_bytes(g, tq):
        b = 0
        b += 2 * g * tq * D * itemsize            # Q tile (double-buffered)
        b += 2 * 2 * g * S * D * itemsize         # resident K, V (double-buffered)
        b += 2 * g * tq * D * itemsize            # output tile
        b += 2 * g * tq * S * itemsize            # attention-weights tile
        if masked:
            mg = g if mask_per_head else 1
            b += 2 * mg * tq * S * 2              # bf16 mask tile
        b += 3 * g * tq * S * 4 + g * tq * D * 4  # f32 intermediates
        return b

    # Query-tile candidates, largest first.  Full S is always legal; avoid
    # <16-row tiles for packed (sub-32-bit) dtypes.
    cands = [S] + [c for c in (1024, 512, 256, 128, 64, 32, 16, 8)
                   if c < S and S % c == 0 and (itemsize >= 4 or c >= 16)]
    tq = cands[-1]
    for c in cands:
        if step_bytes(1, c) <= budget:
            tq = c
            break

    # Heads per block: fill the remaining budget, but keep >= 2 head blocks so
    # the first grid axis can be split across v7x's two TensorCores.
    g_cap = BH // 2 if BH >= 2 else 1
    g_cap = min(g_cap, 64)
    g = 1
    for cand in range(g_cap, 0, -1):
        if BH % cand == 0 and step_bytes(cand, tq) <= budget:
            g = cand
            break
    return tq, g


def scaled_dot_product_attention(Q, K, V, mask=None):
    """Pallas implementation of ScaledDotProductAttention.forward.

    Returns (output, attention_weights), matching the PyTorch module
    (including NaN rows for fully-masked query positions).
    """
    B, H, S, D = Q.shape
    BH = B * H
    dt = Q.dtype
    itemsize = jnp.dtype(dt).itemsize
    inv_sqrt_dk = 1.0 / math.sqrt(D)

    q = Q.reshape(BH, S, D)
    k = K.reshape(BH, S, D)
    v = V.reshape(BH, S, D)

    masked = mask is not None
    mask_per_head = False
    margs = []
    if masked:
        m = jnp.asarray(mask)
        m4 = m.reshape((1,) * (4 - m.ndim) + m.shape)        # rank-4, lead dims = 1
        if m4.shape[0] == 1 and m4.shape[1] == 1:
            # Broadcast over batch & heads: keep one (1, S, S) copy only.
            mvals = jnp.broadcast_to(m4, (1, 1, S, S)).reshape(1, S, S)
        else:
            mask_per_head = True
            mvals = jnp.broadcast_to(m4, (B, H, S, S)).reshape(BH, S, S)
        mvals = (mvals != 0).astype(jnp.bfloat16)            # 0/1 flags, 2 B/elt
        margs = [mvals]

    vmem_cap = _vmem_capacity_bytes()
    budget = vmem_cap // 4
    vmem_limit = int(vmem_cap * 0.6)
    vmem_limit = max(vmem_limit, 32 * 1024 * 1024)
    vmem_limit = min(vmem_limit, 112 * 1024 * 1024)

    tq, g = _choose_tiling(BH, S, D, itemsize, masked, mask_per_head, budget)
    grid = (BH // g, S // tq)

    in_specs = [
        pl.BlockSpec((g, tq, D), lambda i, j: (i, j, 0)),   # Q tile
        pl.BlockSpec((g, S, D), lambda i, j: (i, 0, 0)),    # K resident over j
        pl.BlockSpec((g, S, D), lambda i, j: (i, 0, 0)),    # V resident over j
    ]
    if masked:
        if mask_per_head:
            in_specs.append(pl.BlockSpec((g, tq, S), lambda i, j: (i, j, 0)))
        else:
            # Head-broadcast mask: index_map pins the head-block axis to 0.
            in_specs.append(pl.BlockSpec((1, tq, S), lambda i, j: (0, j, 0)))

    kernel = _make_sdpa_kernel(masked, inv_sqrt_dk)

    out, w = pl.pallas_call(
        kernel,
        out_shape=(
            jax.ShapeDtypeStruct((BH, S, D), dt),
            jax.ShapeDtypeStruct((BH, S, S), dt),
        ),
        grid=grid,
        in_specs=in_specs,
        out_specs=(
            pl.BlockSpec((g, tq, D), lambda i, j: (i, j, 0)),
            pl.BlockSpec((g, tq, S), lambda i, j: (i, j, 0)),
        ),
        compiler_params=pltpu.CompilerParams(
            dimension_semantics=("parallel", "parallel"),
            vmem_limit_bytes=vmem_limit,
        ),
    )(q, k, v, *margs)

    return out.reshape(B, H, S, D), w.reshape(B, H, S, S)


def _reference(Q, K, V, mask=None):
    d_k = Q.shape[-1]
    scores = jnp.einsum("bhqd,bhkd->bhqk", Q, K) / math.sqrt(d_k)
    if mask is not None:
        scores = jnp.where(mask == 0, -jnp.inf, scores)
    w = jax.nn.softmax(scores, axis=-1)
    out = jnp.einsum("bhqk,bhkd->bhqd", w, V)
    return out, w


if __name__ == "__main__":
    # ScaledDotProductAttention has no parameters; only inputs Q, K, V (+mask).
    B, H, S, D = 2, 4, 8, 32
    key = jax.random.PRNGKey(0)
    kq, kk, kv = jax.random.split(key, 3)
    Q = jax.random.normal(kq, (B, H, S, D), dtype=jnp.float32)
    K = jax.random.normal(kk, (B, H, S, D), dtype=jnp.float32)
    V = jax.random.normal(kv, (B, H, S, D), dtype=jnp.float32)

    # 1) No-mask path (specialized kernel without mask input).
    out, w = scaled_dot_product_attention(Q, K, V)
    jax.block_until_ready((out, w))
    ref_out, ref_w = _reference(Q, K, V, None)
    assert jnp.allclose(out, ref_out, atol=2e-3, rtol=2e-3)
    assert jnp.allclose(w, ref_w, atol=2e-3, rtol=2e-3)

    # 2) Causal mask broadcast over batch & heads (fast (1, S, S) mask path).
    causal = jnp.tril(jnp.ones((S, S), jnp.int32))[None, None]   # (1,1,S,S)
    out_m, w_m = scaled_dot_product_attention(Q, K, V, mask=causal)
    jax.block_until_ready((out_m, w_m))
    ref_out_m, ref_w_m = _reference(Q, K, V, causal)
    assert jnp.allclose(out_m, ref_out_m, atol=2e-3, rtol=2e-3)
    assert jnp.allclose(w_m, ref_w_m, atol=2e-3, rtol=2e-3)

    # 3) Per-batch key-padding mask ((BH, S, S) fallback path); every row keeps
    #    at least one valid key so the reference has no NaN rows.
    lens = jnp.array([S, 5])
    pad = (jnp.arange(S)[None, :] < lens[:, None]).astype(jnp.int32)  # (B, S)
    pad = pad[:, None, None, :]                                       # (B,1,1,S)
    out_p, w_p = scaled_dot_product_attention(Q, K, V, mask=pad)
    jax.block_until_ready((out_p, w_p))
    ref_out_p, ref_w_p = _reference(Q, K, V, pad)
    assert jnp.allclose(out_p, ref_out_p, atol=2e-3, rtol=2e-3)
    assert jnp.allclose(w_p, ref_w_p, atol=2e-3, rtol=2e-3)

    print("KERNEL_OK")
</pallas_src>

<mosaic_0001>
module attributes {stable_mosaic.version = 11 : i64} {
  func.func @kernel(%arg0: i32, %arg1: i32, %arg2: memref<4x8x32xf32, #tpu.memory_space<vmem>>, %arg3: memref<4x8x32xf32, #tpu.memory_space<vmem>>, %arg4: memref<4x8x32xf32, #tpu.memory_space<vmem>>, %arg5: memref<4x8x32xf32, #tpu.memory_space<vmem>>, %arg6: memref<4x8x8xf32, #tpu.memory_space<vmem>>) attributes {dimension_semantics = [#tpu.dimension_semantics<parallel>, #tpu.dimension_semantics<parallel>], iteration_bounds = array<i64: 2, 1>, scalar_prefetch = 0 : i64, scratch_operands = 0 : i64, tpu.core_type = #tpu.core_type<tc>, window_params = [{transform_indices = @transform_0, window_bounds = array<i64: 4, 8, 32>}, {transform_indices = @transform_1, window_bounds = array<i64: 4, 8, 32>}, {transform_indices = @transform_2, window_bounds = array<i64: 4, 8, 32>}, {transform_indices = @transform_3, window_bounds = array<i64: 4, 8, 32>}, {transform_indices = @transform_4, window_bounds = array<i64: 4, 8, 8>}]} {
    %c0 = arith.constant 0 : index
    %c0_0 = arith.constant 0 : index
    %c0_1 = arith.constant 0 : index
    %0 = vector.load %arg2[%c0, %c0_0, %c0_1] : memref<4x8x32xf32, #tpu.memory_space<vmem>>, vector<4x8x32xf32>
    %c0_2 = arith.constant 0 : index
    %c0_3 = arith.constant 0 : index
    %c0_4 = arith.constant 0 : index
    %1 = vector.load %arg3[%c0_2, %c0_3, %c0_4] : memref<4x8x32xf32, #tpu.memory_space<vmem>>, vector<4x8x32xf32>
    %c0_5 = arith.constant 0 : index
    %c0_6 = arith.constant 0 : index
    %c0_7 = arith.constant 0 : index
    %2 = vector.load %arg4[%c0_5, %c0_6, %c0_7] : memref<4x8x32xf32, #tpu.memory_space<vmem>>, vector<4x8x32xf32>
    %cst = arith.constant 0.176776692 : f32
    %3 = vector.broadcast %cst : f32 to vector<4x8x32xf32>
    %4 = arith.mulf %0, %3 : vector<4x8x32xf32>
    %cst_8 = arith.constant dense<0.000000e+00> : vector<4x8x8xf32>
    %5 = tpu.matmul %4, %1, %cst_8 {dimension_numbers = #tpu.dot_dimension_numbers<[2], [2], [1], [1], [0, 0, 0, 1, 1, 1], [0], [0]>} : vector<4x8x32xf32>, vector<4x8x32xf32>, vector<4x8x8xf32> -> vector<4x8x8xf32>
    %cst_9 = arith.constant dense<0xFF800000> : vector<4x8xf32>
    %6 = vector.multi_reduction <maximumf>, %5, %cst_9 [2] : vector<4x8x8xf32> to vector<4x8xf32>
    %7 = vector.shape_cast %6 : vector<4x8xf32> to vector<4x8x1xf32>
    %8 = vector.broadcast %7 : vector<4x8x1xf32> to vector<4x8x8xf32>
    %9 = arith.subf %5, %8 : vector<4x8x8xf32>
    %10 = math.exp %9 : vector<4x8x8xf32>
    %cst_10 = arith.constant dense<0.000000e+00> : vector<4x8xf32>
    %11 = vector.multi_reduction <add>, %10, %cst_10 [2] : vector<4x8x8xf32> to vector<4x8xf32>
    %12 = vector.shape_cast %11 : vector<4x8xf32> to vector<4x8x1xf32>
    %cst_11 = arith.constant 1.000000e+00 : f32
    %13 = vector.broadcast %cst_11 : f32 to vector<4x8x1xf32>
    %14 = arith.divf %13, %12 : vector<4x8x1xf32>
    %15 = vector.broadcast %14 : vector<4x8x1xf32> to vector<4x8x8xf32>
    %16 = arith.mulf %10, %15 : vector<4x8x8xf32>
    %c0_12 = arith.constant 0 : index
    %c0_13 = arith.constant 0 : index
    %c0_14 = arith.constant 0 : index
    %17 = vector.load %arg6[%c0_12, %c0_13, %c0_14] : memref<4x8x8xf32, #tpu.memory_space<vmem>>, vector<4x8x8xf32>
    tpu.vector_store %arg6[%c0_12, %c0_13, %c0_14], %16 {strides = array<i32>} : memref<4x8x8xf32, #tpu.memory_space<vmem>>, vector<4x8x8xf32>,
    %cst_15 = arith.constant dense<0.000000e+00> : vector<4x8x32xf32>
    %18 = tpu.matmul %16, %2, %cst_15 {dimension_numbers = #tpu.dot_dimension_numbers<[2], [1], [1], [2], [0, 0, 0, 1, 1, 2], [0], [0]>} : vector<4x8x8xf32>, vector<4x8x32xf32>, vector<4x8x32xf32> -> vector<4x8x32xf32>
    %c0_16 = arith.constant 0 : index
    %c0_17 = arith.constant 0 : index
    %c0_18 = arith.constant 0 : index
    %19 = vector.load %arg5[%c0_16, %c0_17, %c0_18] : memref<4x8x32xf32, #tpu.memory_space<vmem>>, vector<4x8x32xf32>
    tpu.vector_store %arg5[%c0_16, %c0_17, %c0_18], %18 {strides = array<i32>} : memref<4x8x32xf32, #tpu.memory_space<vmem>>, vector<4x8x32xf32>,
    return
  }
  func.func @transform_0(%arg0: i32, %arg1: i32) -> (i32, i32, i32) {
    %c0_i32 = arith.constant 0 : i32
    %c0_i32_0 = arith.constant 0 : i32
    return %arg0, %arg1, %c0_i32 : i32, i32, i32
  }
  func.func @transform_1(%arg0: i32, %arg1: i32) -> (i32, i32, i32) {
    %c0_i32 = arith.constant 0 : i32
    %c0_i32_0 = arith.constant 0 : i32
    %c0_i32_1 = arith.constant 0 : i32
    return %arg0, %c0_i32, %c0_i32_0 : i32, i32, i32
  }
  func.func @transform_2(%arg0: i32, %arg1: i32) -> (i32, i32, i32) {
    %c0_i32 = arith.constant 0 : i32
    %c0_i32_0 = arith.constant 0 : i32
    %c0_i32_1 = arith.constant 0 : i32
    return %arg0, %c0_i32, %c0_i32_0 : i32, i32, i32
  }
  func.func @transform_3(%arg0: i32, %arg1: i32) -> (i32, i32, i32) {
    %c0_i32 = arith.constant 0 : i32
    %c0_i32_0 = arith.constant 0 : i32
    return %arg0, %arg1, %c0_i32 : i32, i32, i32
  }
  func.func @transform_4(%arg0: i32, %arg1: i32) -> (i32, i32, i32) {
    %c0_i32 = arith.constant 0 : i32
    %c0_i32_0 = arith.constant 0 : i32
    return %arg0, %arg1, %c0_i32 : i32, i32, i32
  }
}

</mosaic_0001>

<llo_original>
// kernel: tpu_custom_call.1
$region0: #{tpu_custom_call.1}
  #allocation0 [shape = 'u32[]', space=smem, size = 0x4, offset = 0x4, fixed_abs, tag = 'smem constant byte address 0x4 - core index']
  #allocation1 [shape = 'u32[72,128]{1,0:T(1,128)}', space=vmem, size = 0x9000, scoped, tag = 'internal scratch']
  %s0 = inlined_call_operand.hbm [shape: f32[8,8,32], index: 0, kind: input, shape index: {}]
  %s1 = inlined_call_operand.hbm [shape: f32[8,8,32], index: 1, kind: input, shape index: {}]
  %s2 = inlined_call_operand.hbm [shape: f32[8,8,32], index: 2, kind: input, shape index: {}]
  %s3 = inlined_call_operand.hbm [shape: f32[8,8,32], index: 3, kind: output, shape index: {0}]
  %s4 = inlined_call_operand.hbm [shape: f32[8,8,8], index: 4, kind: output, shape index: {1}]
  %5 = xla_tuple %s3, %s4
  %s6 = sld [smem:[#allocation0]]
  $region65: #{tpu_custom_call.1} parent=0
    _
  %s8 = ssub.s32 1, %s6
  %s9 = scalar_select 0, %s8, %s6
  $region1: #{tpu_custom_call.1} parent=0
    #allocation2 [shape = 'u8[32768]{0}', space=vmem, size = 0x8000, scoped, tag = 'input window, operand 0']
    #allocation3 [shape = 's32[2]{0}', space=sflag, size = 0x8, scoped, tag = 'scoped memory for tpu_custom_call.1']
    #allocation4 [shape = 's32[2]{0}', space=sflag, size = 0x8, scoped, tag = 'scoped memory for tpu_custom_call.1']
    #allocation5 [shape = 'u8[32768]{0}', space=vmem, size = 0x8000, scoped, tag = 'input window, operand 1']
    #allocation6 [shape = 's32[2]{0}', space=sflag, size = 0x8, scoped, tag = 'scoped memory for tpu_custom_call.1']
    #allocation7 [shape = 'u8[32768]{0}', space=vmem, size = 0x8000, scoped, tag = 'input window, operand 2']
    #allocation8 [shape = 'u8[32768]{0}', space=vmem, size = 0x8000, scoped, tag = 'output window, operand 0']
    #allocation9 [shape = 'u8[32768]{0}', space=vmem, size = 0x8000, scoped, tag = 'output window, operand 1']
    #allocation10 [shape = 's32[2]{0}', space=sflag, size = 0x8, scoped, tag = 'scoped memory for tpu_custom_call.1']
    %10 = vsyncpa [#allocation3], 0
    %s11 = scalar_lea.sflag [#allocation3], 1
    %12 = vsyncpa %s11, 0
    %13 = vsyncpa [#allocation6], 0
    %s14 = scalar_lea.sflag [#allocation6], 1
    %15 = vsyncpa %s14, 0
    %16 = vsyncpa [#allocation4], 0
    %s17 = scalar_lea.sflag [#allocation4], 1
    %18 = vsyncpa %s17, 0
    %19 = vsyncpa [#allocation10], 0
    %s20 = scalar_lea.sflag [#allocation10], 1
    %21 = vsyncpa %s20, 0
    loop: start=0, step=1, limit=4
    $region2: #{tpu_custom_call.1} parent=1 // loop_pre_header
      _
    $region3: #{tpu_custom_call.1} parent=1 // loop_header
      %s23 = sphi 0, %s27
      %p24 = scmp.ge.s32.totalorder %s23, 4
      %s30 = sphi 0, %s42
      %s31 = sphi 0, %s38
      %s32 = sphi 0, %s30
      %s33 = sphi 0, %s31
      %s34 = sphi 0, %s32
      %s35 = sphi 0, %s33
      %s47 = sphi 0, %s49
      %s50 = sphi 0, %s47
      %s51 = sphi 0, %s50
      %s67 = sphi 0, %s51
      %s73 = sphi 0, %s75
      %s76 = sphi 0, %s73
      %s77 = sphi 0, %s76
      %s93 = sphi 0, %s77
      %s99 = sphi 0, %s101
      %s102 = sphi 0, %s99
      %s103 = sphi 0, %s102
      %s119 = sphi 0, %s103
      %s127 = sphi 0, %s129
      %s130 = sphi 0, %s127
      %s131 = sphi 0, %s130
      %s147 = sphi 0, %s131
      %s155 = sphi 0, %s157
      %s158 = sphi 0, %s155
      %s159 = sphi 0, %s158
      %s175 = sphi 0, %s159
    $region4: #{tpu_custom_call.1} parent=1 // loop_header_branch
      %26 = sbr.rel (%p24) target = $region8
    $region5: #{tpu_custom_call.1} parent=1 // loop_body
      %s28 = ssub.s32 %s23, 1
      %s29 = ssub.s32 %s23, 2
      %s36 = sadd.s32 1, %s31
      %p37 = scmp.ge.s32.totalorder %s36, 1
      %s38 = scalar_select %p37, 0, %s36
      %s39 = sadd.s32 1, %s30
      %s40 = scalar_select %p37, %s39, %s30
      %p41 = scmp.ge.s32.totalorder %s40, 2
      %s42 = scalar_select %p41, 0, %s40
      %s43 = ssub.s32 %s30, %s42
      %s44 = ssub.s32 %s31, %s38
      %s45 = sor.u32 %s43, %s44
      %p46 = scmp.eq.s32.totalorder %s45, 0
      %s48 = sadd.s32 %s47, 1
      %s49 = scalar_select %p46, %s47, %s48
      %p52 = pneg %p46
      %p53 = scmp.eq.s32.totalorder %s23, 1
      %p54 = por %p52, %p53
      %p55 = scmp.ne.s32.totalorder %s47, %s50
      %p56 = scmp.eq.s32.totalorder %s23, 0
      %p57 = por %p55, %p56
      %p58 = scmp.ne.s32.totalorder %s47, %s50
      %p59 = scmp.eq.s32.totalorder %s28, 1
      %p60 = por %p58, %p59
      %p61 = scmp.ne.s32.totalorder %s50, %s51
      %p62 = scmp.eq.s32.totalorder %s28, 0
      %p63 = por %p61, %p62
      %p64 = scmp.ne.s32.totalorder %s50, %s51
      %p65 = scmp.eq.s32.totalorder %s29, 1
      %p66 = por %p64, %p65
      %p68 = scmp.ne.s32.totalorder %s51, %s67
      %p69 = scmp.eq.s32.totalorder %s29, 0
      %p70 = por %p68, %p69
      %s71 = ssub.s32 %s30, %s42
      %p72 = scmp.eq.s32.totalorder %s71, 0
      %s74 = sadd.s32 %s73, 1
      %s75 = scalar_select %p72, %s73, %s74
      %p78 = pneg %p72
      %p79 = scmp.eq.s32.totalorder %s23, 1
      %p80 = por %p78, %p79
      %p81 = scmp.ne.s32.totalorder %s73, %s76
      %p82 = scmp.eq.s32.totalorder %s23, 0
      %p83 = por %p81, %p82
      %p84 = scmp.ne.s32.totalorder %s73, %s76
      %p85 = scmp.eq.s32.totalorder %s28, 1
      %p86 = por %p84, %p85
      %p87 = scmp.ne.s32.totalorder %s76, %s77
      %p88 = scmp.eq.s32.totalorder %s28, 0
      %p89 = por %p87, %p88
      %p90 = scmp.ne.s32.totalorder %s76, %s77
      %p91 = scmp.eq.s32.totalorder %s29, 1
      %p92 = por %p90, %p91
      %p94 = scmp.ne.s32.totalorder %s77, %s93
      %p95 = scmp.eq.s32.totalorder %s29, 0
      %p96 = por %p94, %p95
      %s97 = ssub.s32 %s30, %s42
      %p98 = scmp.eq.s32.totalorder %s97, 0
      %s100 = sadd.s32 %s99, 1
      %s101 = scalar_select %p98, %s99, %s100
      %p104 = pneg %p98
      %p105 = scmp.eq.s32.totalorder %s23, 1
      %p106 = por %p104, %p105
      %p107 = scmp.ne.s32.totalorder %s99, %s102
      %p108 = scmp.eq.s32.totalorder %s23, 0
      %p109 = por %p107, %p108
      %p110 = scmp.ne.s32.totalorder %s99, %s102
      %p111 = scmp.eq.s32.totalorder %s28, 1
      %p112 = por %p110, %p111
      %p113 = scmp.ne.s32.totalorder %s102, %s103
      %p114 = scmp.eq.s32.totalorder %s28, 0
      %p115 = por %p113, %p114
      %p116 = scmp.ne.s32.totalorder %s102, %s103
      %p117 = scmp.eq.s32.totalorder %s29, 1
      %p118 = por %p116, %p117
      %p120 = scmp.ne.s32.totalorder %s103, %s119
      %p121 = scmp.eq.s32.totalorder %s29, 0
      %p122 = por %p120, %p121
      %s123 = ssub.s32 %s30, %s42
      %s124 = ssub.s32 %s31, %s38
      %s125 = sor.u32 %s123, %s124
      %p126 = scmp.eq.s32.totalorder %s125, 0
      %s128 = sadd.s32 %s127, 1
      %s129 = scalar_select %p126, %s127, %s128
      %p132 = pneg %p126
      %p133 = scmp.eq.s32.totalorder %s23, 1
      %p134 = por %p132, %p133
      %p135 = scmp.ne.s32.totalorder %s127, %s130
      %p136 = scmp.eq.s32.totalorder %s23, 0
      %p137 = por %p135, %p136
      %p138 = scmp.ne.s32.totalorder %s127, %s130
      %p139 = scmp.eq.s32.totalorder %s28, 1
      %p140 = por %p138, %p139
      %p141 = scmp.ne.s32.totalorder %s130, %s131
      %p142 = scmp.eq.s32.totalorder %s28, 0
      %p143 = por %p141, %p142
      %p144 = scmp.ne.s32.totalorder %s130, %s131
      %p145 = scmp.eq.s32.totalorder %s29, 1
      %p146 = por %p144, %p145
      %p148 = scmp.ne.s32.totalorder %s131, %s147
      %p149 = scmp.eq.s32.totalorder %s29, 0
      %p150 = por %p148, %p149
      %s151 = ssub.s32 %s30, %s42
      %s152 = ssub.s32 %s31, %s38
      %s153 = sor.u32 %s151, %s152
      %p154 = scmp.eq.s32.totalorder %s153, 0
      %s156 = sadd.s32 %s155, 1
      %s157 = scalar_select %p154, %s155, %s156
      %p160 = pneg %p154
      %p161 = scmp.eq.s32.totalorder %s23, 1
      %p162 = por %p160, %p161
      %p163 = scmp.ne.s32.totalorder %s155, %s158
      %p164 = scmp.eq.s32.totalorder %s23, 0
      %p165 = por %p163, %p164
      %p166 = scmp.ne.s32.totalorder %s155, %s158
      %p167 = scmp.eq.s32.totalorder %s28, 1
      %p168 = por %p166, %p167
      %p169 = scmp.ne.s32.totalorder %s158, %s159
      %p170 = scmp.eq.s32.totalorder %s28, 0
      %p171 = por %p169, %p170
      %p172 = scmp.ne.s32.totalorder %s158, %s159
      %p173 = scmp.eq.s32.totalorder %s29, 1
      %p174 = por %p172, %p173
      %p176 = scmp.ne.s32.totalorder %s159, %s175
      %p177 = scmp.eq.s32.totalorder %s29, 0
      %p178 = por %p176, %p177
      %p179 = scmp.le.s32.totalorder 1, %s23
      %p180 = scmp.lt.s32.totalorder %s23, 3
      %p181 = pnand %p179, %p180
      %p182 = pneg %p181
      // Predicated region
      $region9: #{tpu_custom_call.1} parent=5 // pred_check
        _
      $region10: #{tpu_custom_call.1} parent=5 // pred_check_branch
        %184 = sbr.rel (%p181) target = $region12
      $region11: #{tpu_custom_call.1} parent=5 // pred_region
        %s185 = ssub.s32 %s23, 1
      $region12: #{tpu_custom_call.1} parent=5 // pred_fallthru
        _
      %p186 = scmp.lt.s32.totalorder %s23, 2
      // Predicated region
      $region13: #{tpu_custom_call.1} parent=5 // pred_check
        %p187 = pneg %p186
      $region14: #{tpu_custom_call.1} parent=5 // pred_check_branch
        %189 = sbr.rel (%p187) target = $region16
      $region15: #{tpu_custom_call.1} parent=5 // pred_region
        // Predicated region
        $region17: #{tpu_custom_call.1} parent=15 // pred_check
          %p190 = pneg %p57
        $region18: #{tpu_custom_call.1} parent=15 // pred_check_branch
          %192 = sbr.rel (%p190) target = $region20
        $region19: #{tpu_custom_call.1} parent=15 // pred_region
          %s193 = sand.u32 %s47, 1
          %s194 = scalar_lea.sflag [#allocation3], %s193
          %s195 = sand.u32 %s47, 1
          %s196 = smul.addr %s195, 32
          %s197 = scalar_lea.vmem [#allocation2], %s196
          %s198 = smul.u32 4, %s30
          %200 = vsyncadd %s194, 0
          %s201 = sadd.s32 %s31, %s198
          %s202 = smul.addr %s201, 8
          %s203 = scalar_lea.hbm %s0, %s202
          %s204 = sshll.u32 %s203, 4
          %s205 = int_to_ptr.hbm [resolvable:$true] %s204
          %s206 = sshll.u32 %s197, 4
          %s207 = int_to_ptr.vmem [resolvable:$true] %s206
          %212 = dma.hbm_to_vmem [thread:$0]  %s205, 512, %s207, %s194, 128, 128, 8
        $region20: #{tpu_custom_call.1} parent=15 // pred_fallthru
          _
        // Predicated region
        $region21: #{tpu_custom_call.1} parent=15 // pred_check
          %p213 = pneg %p83
        $region22: #{tpu_custom_call.1} parent=15 // pred_check_branch
          %215 = sbr.rel (%p213) target = $region24
        $region23: #{tpu_custom_call.1} parent=15 // pred_region
          %s216 = sand.u32 %s23, 1
          %s217 = scalar_lea.sflag [#allocation6], %s216
          %s218 = sand.u32 %s73, 1
          %s219 = smul.addr %s218, 32
          %s220 = scalar_lea.vmem [#allocation5], %s219
          %s221 = smul.u32 4, %s30
          %223 = vsyncadd %s217, 0
          %s224 = smul.addr %s221, 8
          %s225 = scalar_lea.hbm %s1, %s224
          %s226 = sshll.u32 %s225, 4
          %s227 = int_to_ptr.hbm [resolvable:$true] %s226
          %s228 = sshll.u32 %s220, 4
          %s229 = int_to_ptr.vmem [resolvable:$true] %s228
          %234 = dma.hbm_to_vmem [thread:$0]  %s227, 512, %s229, %s217, 128, 128, 8
        $region24: #{tpu_custom_call.1} parent=15 // pred_fallthru
          _
        // Predicated region
        $region25: #{tpu_custom_call.1} parent=15 // pred_check
          %p235 = pneg %p109
        $region26: #{tpu_custom_call.1} parent=15 // pred_check_branch
          %237 = sbr.rel (%p235) target = $region28
        $region27: #{tpu_custom_call.1} parent=15 // pred_region
          %s238 = sand.u32 %s23, 1
          %s239 = scalar_lea.sflag [#allocation6], %s238
          %s240 = sand.u32 %s99, 1
          %s241 = smul.addr %s240, 32
          %s242 = scalar_lea.vmem [#allocation7], %s241
          %s243 = smul.u32 4, %s30
          %245 = vsyncadd %s239, 0
          %s246 = smul.addr %s243, 8
          %s247 = scalar_lea.hbm %s2, %s246
          %s248 = sshll.u32 %s247, 4
          %s249 = int_to_ptr.hbm [resolvable:$true] %s248
          %s250 = sshll.u32 %s242, 4
          %s251 = int_to_ptr.vmem [resolvable:$true] %s250
          %256 = dma.hbm_to_vmem [thread:$0]  %s249, 512, %s251, %s239, 128, 128, 8
        $region28: #{tpu_custom_call.1} parent=15 // pred_fallthru
          _
      $region16: #{tpu_custom_call.1} parent=5 // pred_fallthru
        _
      %p257 = scmp.le.s32.totalorder 1, %s23
      %p258 = scmp.lt.s32.totalorder %s23, 3
      %p259 = pnand %p257, %p258
      %p260 = pneg %p259
      // Predicated region
      $region29: #{tpu_custom_call.1} parent=5 // pred_check
        _
      $region30: #{tpu_custom_call.1} parent=5 // pred_check_branch
        %262 = sbr.rel (%p259) target = $region32
      $region31: #{tpu_custom_call.1} parent=5 // pred_region
        %s263 = ssub.s32 %s23, 1
        %s264 = sand.u32 %s50, 1
        %s265 = scalar_lea.sflag [#allocation3], %s264
        %s266 = sand.u32 %s50, 1
        %s267 = smul.addr %s266, 32
        %s268 = scalar_lea.vmem [#allocation2], %s267
        // Predicated region
        $region33: #{tpu_custom_call.1} parent=31 // pred_check
          %p269 = pneg %p63
        $region34: #{tpu_custom_call.1} parent=31 // pred_check_branch
          %271 = sbr.rel (%p269) target = $region36
        $region35: #{tpu_custom_call.1} parent=31 // pred_region
          %273 = dma.done %s265, 512
        $region36: #{tpu_custom_call.1} parent=31 // pred_fallthru
          _
        %s274 = sand.u32 %s28, 1
        %s275 = scalar_lea.sflag [#allocation6], %s274
        %s276 = sand.u32 %s76, 1
        %s277 = smul.addr %s276, 32
        %s278 = scalar_lea.vmem [#allocation5], %s277
        // Predicated region
        $region37: #{tpu_custom_call.1} parent=31 // pred_check
          %p279 = pneg %p89
        $region38: #{tpu_custom_call.1} parent=31 // pred_check_branch
          %281 = sbr.rel (%p279) target = $region40
        $region39: #{tpu_custom_call.1} parent=31 // pred_region
          %283 = dma.done %s275, 512
        $region40: #{tpu_custom_call.1} parent=31 // pred_fallthru
          _
        %s284 = sand.u32 %s28, 1
        %s285 = scalar_lea.sflag [#allocation6], %s284
        %s286 = sand.u32 %s102, 1
        %s287 = smul.addr %s286, 32
        %s288 = scalar_lea.vmem [#allocation7], %s287
        // Predicated region
        $region41: #{tpu_custom_call.1} parent=31 // pred_check
          %p289 = pneg %p115
        $region42: #{tpu_custom_call.1} parent=31 // pred_check_branch
          %291 = sbr.rel (%p289) target = $region44
        $region43: #{tpu_custom_call.1} parent=31 // pred_region
          %293 = dma.done %s285, 512
        $region44: #{tpu_custom_call.1} parent=31 // pred_fallthru
          _
        %s294 = sand.u32 %s50, 1
        %s295 = scalar_lea.sflag [#allocation3], %s294
        %s296 = sand.u32 %s50, 1
        %s297 = smul.addr %s296, 32
        %s298 = scalar_lea.vmem [#allocation2], %s297
        %p299 = pneg %p63
        %p300 = pneg %p60
        %s301 = sand.u32 %s28, 1
        %s302 = scalar_lea.sflag [#allocation6], %s301
        %s303 = sand.u32 %s76, 1
        %s304 = smul.addr %s303, 32
        %s305 = scalar_lea.vmem [#allocation5], %s304
        %p306 = pneg %p89
        %p307 = pneg %p86
        %s308 = sand.u32 %s28, 1
        %s309 = scalar_lea.sflag [#allocation6], %s308
        %s310 = sand.u32 %s102, 1
        %s311 = smul.addr %s310, 32
        %s312 = scalar_lea.vmem [#allocation7], %s311
        %p313 = pneg %p115
        %p314 = pneg %p112
        %p315 = pneg %p143
        %p316 = pneg %p140
        %s317 = sand.u32 %s130, 1
        %s318 = scalar_lea.sflag [#allocation4], %s317
        %s319 = sand.u32 %s130, 1
        %s320 = smul.addr %s319, 32
        %s321 = scalar_lea.vmem [#allocation8], %s320
        %p322 = pneg %p171
        %p323 = pneg %p168
        %s324 = sand.u32 %s158, 1
        %s325 = scalar_lea.sflag [#allocation10], %s324
        %s326 = sand.u32 %s158, 1
        %s327 = smul.addr %s326, 32
        %s328 = scalar_lea.vmem [#allocation9], %s327
        %s329 = smul.u32 4, %s32
        %s330 = smul.u32 4, %s32
        %s331 = smul.u32 4, %s32
        %s332 = smul.u32 4, %s32
        %s333 = smul.u32 4, %s32
        %v334 = vld [vmem:[%s268] sm:$0xff]
        %v335 = vld [vmem:[%s268 + $0x8] sm:$0xff]
        %v336 = vld [vmem:[%s268 + $0x10] sm:$0xff]
        %v337 = vld [vmem:[%s268 + $0x18] sm:$0xff]
        %v338 = vld [vmem:[%s278] sm:$0xff]
        %v339 = vld [vmem:[%s278 + $0x8] sm:$0xff]
        %v340 = vld [vmem:[%s278 + $0x10] sm:$0xff]
        %v341 = vld [vmem:[%s278 + $0x18] sm:$0xff]
        %v342 = vld [vmem:[%s288] sm:$0xff]
        %v343 = vld [vmem:[%s288 + $0x8] sm:$0xff]
        %v344 = vld [vmem:[%s288 + $0x10] sm:$0xff]
        %v345 = vld [vmem:[%s288 + $0x18] sm:$0xff]
        %v346 = vmul.f32 %v334, 0.17677669
        %v347 = vmul.f32 %v335, 0.17677669
        %v348 = vmul.f32 %v336, 0.17677669
        %v349 = vmul.f32 %v337, 0.17677669
        %vm350 = vcmask 261120
        %v352 = vsel %vm350, %v346, 0
        %v355 = vsel %vm350, %v338, 0
        %357 = vmatpush.xpose.msra.mxu0 0.0
        %358 = vmatpush.xpose.msra.mxu0 0.0
        %359 = vmatpush.xpose.msra.mxu0 0.0
        %360 = vmatpush.xpose.msra.mxu0 0.0
        %361 = vmatpush.xpose.msra.mxu0 0.0
        %362 = vmatpush.xpose.msra.mxu0 0.0
        %363 = vmatpush.xpose.msra.mxu0 0.0
        %364 = vmatpush.xpose.msra.mxu0 0.0
        %365 = vmatpush.xpose.msra.mxu0 0.0
        %366 = vmatpush.xpose.msra.mxu0 0.0
        %367 = vmatpush.xpose.msra.mxu0 0.0
        %368 = vmatpush.xpose.msra.mxu0 0.0
        %369 = vmatpush.xpose.msra.mxu0 0.0
        %370 = vmatpush.xpose.msra.mxu0 0.0
        %371 = vmatpush.xpose.msra.mxu0 0.0
        %372 = vmatpush.xpose.msra.mxu0 %v355
        %373 = vmatmul.f32.gmra.mxu0 %v352
        %v374 = vpop.f32.mrf.mxu0
        %v375 = vadd.f32 0.0, %v374
        %376 = vdwg.mxu0
        %v378 = vsel %vm350, %v347, 0
        %v381 = vsel %vm350, %v339, 0
        %383 = vmatpush.xpose.msra.mxu0 0.0
        %384 = vmatpush.xpose.msra.mxu0 0.0
        %385 = vmatpush.xpose.msra.mxu0 0.0
        %386 = vmatpush.xpose.msra.mxu0 0.0
        %387 = vmatpush.xpose.msra.mxu0 0.0
        %388 = vmatpush.xpose.msra.mxu0 0.0
        %389 = vmatpush.xpose.msra.mxu0 0.0
        %390 = vmatpush.xpose.msra.mxu0 0.0
        %391 = vmatpush.xpose.msra.mxu0 0.0
        %392 = vmatpush.xpose.msra.mxu0 0.0
        %393 = vmatpush.xpose.msra.mxu0 0.0
        %394 = vmatpush.xpose.msra.mxu0 0.0
        %395 = vmatpush.xpose.msra.mxu0 0.0
        %396 = vmatpush.xpose.msra.mxu0 0.0
        %397 = vmatpush.xpose.msra.mxu0 0.0
        %398 = vmatpush.xpose.msra.mxu0 %v381
        %399 = vmatmul.f32.gmra.mxu0 %v378
        %v400 = vpop.f32.mrf.mxu0
        %v401 = vadd.f32 0.0, %v400
        %402 = vdwg.mxu0
        %v404 = vsel %vm350, %v348, 0
        %v407 = vsel %vm350, %v340, 0
        %409 = vmatpush.xpose.msra.mxu0 0.0
        %410 = vmatpush.xpose.msra.mxu0 0.0
        %411 = vmatpush.xpose.msra.mxu0 0.0
        %412 = vmatpush.xpose.msra.mxu0 0.0
        %413 = vmatpush.xpose.msra.mxu0 0.0
        %414 = vmatpush.xpose.msra.mxu0 0.0
        %415 = vmatpush.xpose.msra.mxu0 0.0
        %416 = vmatpush.xpose.msra.mxu0 0.0
        %417 = vmatpush.xpose.msra.mxu0 0.0
        %418 = vmatpush.xpose.msra.mxu0 0.0
        %419 = vmatpush.xpose.msra.mxu0 0.0
        %420 = vmatpush.xpose.msra.mxu0 0.0
        %421 = vmatpush.xpose.msra.mxu0 0.0
        %422 = vmatpush.xpose.msra.mxu0 0.0
        %423 = vmatpush.xpose.msra.mxu0 0.0
        %424 = vmatpush.xpose.msra.mxu0 %v407
        %425 = vmatmul.f32.gmra.mxu0 %v404
        %v426 = vpop.f32.mrf.mxu0
        %v427 = vadd.f32 0.0, %v426
        %428 = vdwg.mxu0
        %v430 = vsel %vm350, %v349, 0
        %v433 = vsel %vm350, %v341, 0
        %435 = vmatpush.xpose.msra.mxu0 0.0
        %436 = vmatpush.xpose.msra.mxu0 0.0
        %437 = vmatpush.xpose.msra.mxu0 0.0
        %438 = vmatpush.xpose.msra.mxu0 0.0
        %439 = vmatpush.xpose.msra.mxu0 0.0
        %440 = vmatpush.xpose.msra.mxu0 0.0
        %441 = vmatpush.xpose.msra.mxu0 0.0
        %442 = vmatpush.xpose.msra.mxu0 0.0
        %443 = vmatpush.xpose.msra.mxu0 0.0
        %444 = vmatpush.xpose.msra.mxu0 0.0
        %445 = vmatpush.xpose.msra.mxu0 0.0
        %446 = vmatpush.xpose.msra.mxu0 0.0
        %447 = vmatpush.xpose.msra.mxu0 0.0
        %448 = vmatpush.xpose.msra.mxu0 0.0
        %449 = vmatpush.xpose.msra.mxu0 0.0
        %450 = vmatpush.xpose.msra.mxu0 %v433
        %451 = vmatmul.f32.gmra.mxu0 %v430
        %v452 = vpop.f32.mrf.mxu0
        %v453 = vadd.f32 0.0, %v452
        %454 = vdwg.mxu0
        %vm455 = vcmask 64512
        %v456 = vsel %vm455, %v375, -inf
        %457 = vmax.xlane.f32.xlu0 %v456
        %v458 = vpop.xlane.xlu0 %457
        %v459 = vsel %vm455, %v401, -inf
        %460 = vmax.xlane.f32.xlu0 %v459
        %v461 = vpop.xlane.xlu0 %460
        %v462 = vsel %vm455, %v427, -inf
        %463 = vmax.xlane.f32.xlu0 %v462
        %v464 = vpop.xlane.xlu0 %463
        %v465 = vsel %vm455, %v453, -inf
        %466 = vmax.xlane.f32.xlu0 %v465
        %v467 = vpop.xlane.xlu0 %466
        %v468 = vsub.f32 %v375, %v458
        %v469 = vsub.f32 %v401, %v461
        %v470 = vsub.f32 %v427, %v464
        %v471 = vsub.f32 %v453, %v467
        %v472 = vmul.f32 %v468, 1.442695
        %v473 = vpow.pop %v472
        %v474 = vmul.f32 %v469, 1.442695
        %v475 = vpow.pop %v474
        %v476 = vmul.f32 %v470, 1.442695
        %v477 = vpow.pop %v476
        %v478 = vmul.f32 %v471, 1.442695
        %v479 = vpow.pop %v478
        %v480 = vsel %vm455, %v473, 0.0
        %481 = vadd.xlane.f32.xlu0 %v480
        %v482 = vpop.xlane.xlu0 %481
        %v483 = vsel %vm455, %v475, 0.0
        %484 = vadd.xlane.f32.xlu0 %v483
        %v485 = vpop.xlane.xlu0 %484
        %v486 = vsel %vm455, %v477, 0.0
        %487 = vadd.xlane.f32.xlu0 %v486
        %v488 = vpop.xlane.xlu0 %487
        %v489 = vsel %vm455, %v479, 0.0
        %490 = vadd.xlane.f32.xlu0 %v489
        %v491 = vpop.xlane.xlu0 %490
        %v492 = vrcp.pop %v482
        %v493 = vmul.f32 %v482, %v492
        %v494 = vsub.f32 1.0, %v493
        %v495 = vmul.f32 %v492, %v494
        %v496 = vadd.f32 %v492, %v495
        %vm497 = vweird.f32 %v482
        %vm498 = vweird.f32 %v492
        %vm499 = vmor %vm497, %vm498
        %v500 = vsel %vm499, %v492, %v496
        %v501 = vand.u32 2147483647, %v482
        %vm502 = vcmp.eq.f32.partialorder %v501, 8.507059e+37
        %v503 = vand.u32 %v482, 2147483648
        %v504 = vor.u32 1.1754944e-38, %v503
        %v505 = vsel %vm502, %v504, %v500
        %v506 = vmul.f32 1.0, %v505
        %v507 = vrcp.pop %v485
        %v508 = vmul.f32 %v485, %v507
        %v509 = vsub.f32 1.0, %v508
        %v510 = vmul.f32 %v507, %v509
        %v511 = vadd.f32 %v507, %v510
        %vm512 = vweird.f32 %v485
        %vm513 = vweird.f32 %v507
        %vm514 = vmor %vm512, %vm513
        %v515 = vsel %vm514, %v507, %v511
        %v516 = vand.u32 2147483647, %v485
        %vm517 = vcmp.eq.f32.partialorder %v516, 8.507059e+37
        %v518 = vand.u32 %v485, 2147483648
        %v519 = vor.u32 1.1754944e-38, %v518
        %v520 = vsel %vm517, %v519, %v515
        %v521 = vmul.f32 1.0, %v520
        %v522 = vrcp.pop %v488
        %v523 = vmul.f32 %v488, %v522
        %v524 = vsub.f32 1.0, %v523
        %v525 = vmul.f32 %v522, %v524
        %v526 = vadd.f32 %v522, %v525
        %vm527 = vweird.f32 %v488
        %vm528 = vweird.f32 %v522
        %vm529 = vmor %vm527, %vm528
        %v530 = vsel %vm529, %v522, %v526
        %v531 = vand.u32 2147483647, %v488
        %vm532 = vcmp.eq.f32.partialorder %v531, 8.507059e+37
        %v533 = vand.u32 %v488, 2147483648
        %v534 = vor.u32 1.1754944e-38, %v533
        %v535 = vsel %vm532, %v534, %v530
        %v536 = vmul.f32 1.0, %v535
        %v537 = vrcp.pop %v491
        %v538 = vmul.f32 %v491, %v537
        %v539 = vsub.f32 1.0, %v538
        %v540 = vmul.f32 %v537, %v539
        %v541 = vadd.f32 %v537, %v540
        %vm542 = vweird.f32 %v491
        %vm543 = vweird.f32 %v537
        %vm544 = vmor %vm542, %vm543
        %v545 = vsel %vm544, %v537, %v541
        %v546 = vand.u32 2147483647, %v491
        %vm547 = vcmp.eq.f32.partialorder %v546, 8.507059e+37
        %v548 = vand.u32 %v491, 2147483648
        %v549 = vor.u32 1.1754944e-38, %v548
        %v550 = vsel %vm547, %v549, %v545
        %v551 = vmul.f32 1.0, %v550
        %v552 = vmul.f32 %v473, %v506
        %v553 = vmul.f32 %v475, %v521
        %v554 = vmul.f32 %v477, %v536
        %v555 = vmul.f32 %v479, %v551
        %556 = vst.msk [vmem:[%s328] sm:$0xff] %vm455, %v552
        %557 = vst.msk [vmem:[%s328 + $0x8] sm:$0xff] %vm455, %v553
        %558 = vst.msk [vmem:[%s328 + $0x10] sm:$0xff] %vm455, %v554
        %559 = vst.msk [vmem:[%s328 + $0x18] sm:$0xff] %vm455, %v555
        %v561 = vsel %vm455, %v552, 0
        %563 = vmatpush.msra.mxu0 0.0
        %564 = vmatpush.msra.mxu0 0.0
        %565 = vmatpush.msra.mxu0 0.0
        %566 = vmatpush.msra.mxu0 0.0
        %567 = vmatpush.msra.mxu0 0.0
        %568 = vmatpush.msra.mxu0 0.0
        %569 = vmatpush.msra.mxu0 0.0
        %570 = vmatpush.msra.mxu0 0.0
        %571 = vmatpush.msra.mxu0 0.0
        %572 = vmatpush.msra.mxu0 0.0
        %573 = vmatpush.msra.mxu0 0.0
        %574 = vmatpush.msra.mxu0 0.0
        %575 = vmatpush.msra.mxu0 0.0
        %576 = vmatpush.msra.mxu0 0.0
        %577 = vmatpush.msra.mxu0 0.0
        %578 = vmatpush.msra.mxu0 %v342
        %579 = vmatmul.f32.gmra.mxu0 %v561
        %v580 = vpop.f32.mrf.mxu0
        %v581 = vadd.f32 0.0, %v580
        %582 = vdwg.mxu0
        %v584 = vsel %vm455, %v553, 0
        %586 = vmatpush.msra.mxu0 0.0
        %587 = vmatpush.msra.mxu0 0.0
        %588 = vmatpush.msra.mxu0 0.0
        %589 = vmatpush.msra.mxu0 0.0
        %590 = vmatpush.msra.mxu0 0.0
        %591 = vmatpush.msra.mxu0 0.0
        %592 = vmatpush.msra.mxu0 0.0
        %593 = vmatpush.msra.mxu0 0.0
        %594 = vmatpush.msra.mxu0 0.0
        %595 = vmatpush.msra.mxu0 0.0
        %596 = vmatpush.msra.mxu0 0.0
        %597 = vmatpush.msra.mxu0 0.0
        %598 = vmatpush.msra.mxu0 0.0
        %599 = vmatpush.msra.mxu0 0.0
        %600 = vmatpush.msra.mxu0 0.0
        %601 = vmatpush.msra.mxu0 %v343
        %602 = vmatmul.f32.gmra.mxu0 %v584
        %v603 = vpop.f32.mrf.mxu0
        %v604 = vadd.f32 0.0, %v603
        %605 = vdwg.mxu0
        %v607 = vsel %vm455, %v554, 0
        %609 = vmatpush.msra.mxu0 0.0
        %610 = vmatpush.msra.mxu0 0.0
        %611 = vmatpush.msra.mxu0 0.0
        %612 = vmatpush.msra.mxu0 0.0
        %613 = vmatpush.msra.mxu0 0.0
        %614 = vmatpush.msra.mxu0 0.0
        %615 = vmatpush.msra.mxu0 0.0
        %616 = vmatpush.msra.mxu0 0.0
        %617 = vmatpush.msra.mxu0 0.0
        %618 = vmatpush.msra.mxu0 0.0
        %619 = vmatpush.msra.mxu0 0.0
        %620 = vmatpush.msra.mxu0 0.0
        %621 = vmatpush.msra.mxu0 0.0
        %622 = vmatpush.msra.mxu0 0.0
        %623 = vmatpush.msra.mxu0 0.0
        %624 = vmatpush.msra.mxu0 %v344
        %625 = vmatmul.f32.gmra.mxu0 %v607
        %v626 = vpop.f32.mrf.mxu0
        %v627 = vadd.f32 0.0, %v626
        %628 = vdwg.mxu0
        %v630 = vsel %vm455, %v555, 0
        %632 = vmatpush.msra.mxu0 0.0
        %633 = vmatpush.msra.mxu0 0.0
        %634 = vmatpush.msra.mxu0 0.0
        %635 = vmatpush.msra.mxu0 0.0
        %636 = vmatpush.msra.mxu0 0.0
        %637 = vmatpush.msra.mxu0 0.0
        %638 = vmatpush.msra.mxu0 0.0
        %639 = vmatpush.msra.mxu0 0.0
        %640 = vmatpush.msra.mxu0 0.0
        %641 = vmatpush.msra.mxu0 0.0
        %642 = vmatpush.msra.mxu0 0.0
        %643 = vmatpush.msra.mxu0 0.0
        %644 = vmatpush.msra.mxu0 0.0
        %645 = vmatpush.msra.mxu0 0.0
        %646 = vmatpush.msra.mxu0 0.0
        %647 = vmatpush.msra.mxu0 %v345
        %648 = vmatmul.f32.gmra.mxu0 %v630
        %v649 = vpop.f32.mrf.mxu0
        %v650 = vadd.f32 0.0, %v649
        %651 = vdwg.mxu0
        %652 = vst.msk [vmem:[%s321] sm:$0xff] %vm350, %v581
        %653 = vst.msk [vmem:[%s321 + $0x8] sm:$0xff] %vm350, %v604
        %654 = vst.msk [vmem:[%s321 + $0x10] sm:$0xff] %vm350, %v627
        %655 = vst.msk [vmem:[%s321 + $0x18] sm:$0xff] %vm350, %v650
        %s656 = sand.u32 %s130, 1
        %s657 = scalar_lea.sflag [#allocation4], %s656
        %s658 = sand.u32 %s130, 1
        %s659 = smul.addr %s658, 32
        %s660 = scalar_lea.vmem [#allocation8], %s659
        %s661 = sand.u32 %s158, 1
        %s662 = scalar_lea.sflag [#allocation10], %s661
        %s663 = sand.u32 %s158, 1
        %s664 = smul.addr %s663, 32
        %s665 = scalar_lea.vmem [#allocation9], %s664
        // Predicated region
        $region45: #{tpu_custom_call.1} parent=31 // pred_check
          %p666 = pneg %p140
        $region46: #{tpu_custom_call.1} parent=31 // pred_check_branch
          %668 = sbr.rel (%p666) target = $region48
        $region47: #{tpu_custom_call.1} parent=31 // pred_region
          %s669 = smul.u32 4, %s32
          %671 = vsyncadd %s657, 0
          %s672 = sadd.s32 %s33, %s669
          %s673 = smul.addr %s672, 8
          %s674 = scalar_lea.hbm %s3, %s673
          %s675 = sshll.u32 %s660, 4
          %s676 = int_to_ptr.vmem [resolvable:$true] %s675
          %s677 = sshll.u32 %s674, 4
          %s678 = int_to_ptr.hbm [resolvable:$true] %s677
          %683 = dma.vmem_to_hbm [thread:$0]  %s676, 512, %s678, %s657, 128, 128, 8
        $region48: #{tpu_custom_call.1} parent=31 // pred_fallthru
          _
        // Predicated region
        $region49: #{tpu_custom_call.1} parent=31 // pred_check
          %p684 = pneg %p168
        $region50: #{tpu_custom_call.1} parent=31 // pred_check_branch
          %686 = sbr.rel (%p684) target = $region52
        $region51: #{tpu_custom_call.1} parent=31 // pred_region
          %s687 = smul.u32 4, %s32
          %689 = vsyncadd %s662, 0
          %s690 = sadd.s32 %s33, %s687
          %s691 = smul.addr %s690, 8
          %s692 = scalar_lea.hbm %s4, %s691
          %s693 = sshll.u32 %s665, 4
          %s694 = int_to_ptr.vmem [resolvable:$true] %s693
          %s695 = sshll.u32 %s692, 4
          %s696 = int_to_ptr.hbm [resolvable:$true] %s695
          %701 = dma.vmem_to_hbm [thread:$0]  %s694, 512, %s696, %s662, 128, 128, 8
        $region52: #{tpu_custom_call.1} parent=31 // pred_fallthru
          _
      $region32: #{tpu_custom_call.1} parent=5 // pred_fallthru
        _
      %p702 = scmp.le.s32.totalorder 2, %s23
      // Predicated region
      $region53: #{tpu_custom_call.1} parent=5 // pred_check
        %p703 = pneg %p702
      $region54: #{tpu_custom_call.1} parent=5 // pred_check_branch
        %705 = sbr.rel (%p703) target = $region56
      $region55: #{tpu_custom_call.1} parent=5 // pred_region
        %s706 = ssub.s32 %s23, 2
        // Predicated region
        $region57: #{tpu_custom_call.1} parent=55 // pred_check
          %p707 = pneg %p146
        $region58: #{tpu_custom_call.1} parent=55 // pred_check_branch
          %709 = sbr.rel (%p707) target = $region60
        $region59: #{tpu_custom_call.1} parent=55 // pred_region
          %s710 = sand.u32 %s131, 1
          %s711 = scalar_lea.sflag [#allocation4], %s710
          %s712 = sand.u32 %s131, 1
          %s713 = smul.addr %s712, 32
          %s714 = scalar_lea.vmem [#allocation8], %s713
          %716 = dma.done %s711, 512
        $region60: #{tpu_custom_call.1} parent=55 // pred_fallthru
          _
        // Predicated region
        $region61: #{tpu_custom_call.1} parent=55 // pred_check
          %p717 = pneg %p174
        $region62: #{tpu_custom_call.1} parent=55 // pred_check_branch
          %719 = sbr.rel (%p717) target = $region64
        $region63: #{tpu_custom_call.1} parent=55 // pred_region
          %s720 = sand.u32 %s159, 1
          %s721 = scalar_lea.sflag [#allocation10], %s720
          %s722 = sand.u32 %s159, 1
          %s723 = smul.addr %s722, 32
          %s724 = scalar_lea.vmem [#allocation9], %s723
          %726 = dma.done %s721, 512
        $region64: #{tpu_custom_call.1} parent=55 // pred_fallthru
          _
      $region56: #{tpu_custom_call.1} parent=5 // pred_fallthru
        _
    $region6: #{tpu_custom_call.1} parent=1 // loop_footer
      %s27 = sadd.s32 1, %s23
    $region7: #{tpu_custom_call.1} parent=1 // loop_footer_branch
      %22 = sbr.rel target = $region3
    $region8: #{tpu_custom_call.1} parent=1 // loop_exit
      _
    %727 = vsyncpa [#allocation3], 1
    %s728 = scalar_lea.sflag [#allocation3], 1
    %729 = vsyncpa %s728, 1
    %730 = vsyncpa [#allocation6], 1
    %s731 = scalar_lea.sflag [#allocation6], 1
    %732 = vsyncpa %s731, 1
    %733 = vsyncpa [#allocation4], 1
    %s734 = scalar_lea.sflag [#allocation4], 1
    %735 = vsyncpa %s734, 1
    %736 = vsyncpa [#allocation10], 1
    %s737 = scalar_lea.sflag [#allocation10], 1
    %738 = vsyncpa %s737, 1

</llo_original>
